<compile_context>
chip_gen: v6e
topology: v6e:2x2x1
jax: 0.10.0
libtpu: 0.0.40
codegen_flags: <defaults>
</compile_context>

<pallas_src>
import functools

import jax
import jax.numpy as jnp
from jax.experimental import pallas as pl
from jax.experimental.pallas import tpu as pltpu


def lstm_fc_kernel(emb_ref, wih_ref, whh_ref, b_ref, fcw_ref, fcb_ref, out_ref,
                   *, seq_len, batch, hidden):
    """LSTM recurrence + first/last-state concat + FC head on a single core.

    emb_ref : (S*B, E)   time-major embedded sequence, flattened, bf16
    wih_ref : (E, 4H)    fused input->gate weights, gate order (i,f,o,g), bf16
    whh_ref : (H, 4H)    fused hidden->gate weights, gate order (i,f,o,g), bf16
    b_ref   : (1, 4H)    b_ih + b_hh, gate order (i,f,o,g), f32
    fcw_ref : (2, H, T)  fc weight split into [states[0]-part, states[-1]-part]
    fcb_ref : (1, T)     fc bias
    out_ref : (B, T)     softmax(relu(fc(cat(states[0], states[-1]))))
    """
    H = hidden

    # --- Prologue: one large, MXU-efficient input-projection GEMM for all
    # timesteps at once, with the gate bias folded in.  f32 accumulation.
    xw = jnp.dot(emb_ref[...], wih_ref[...],
                 preferred_element_type=jnp.float32) + b_ref[...]     # (S*B, 4H)

    # Loop-invariant recurrent weights: read once, held across the recurrence.
    whh = whh_ref[...]                                                # (H, 4H) bf16

    def cell(xw_t, h_prev, c_prev):
        # Single fused (B, 4H) gate matmul; 4H is exactly lane-dense (128).
        gates = xw_t + jnp.dot(h_prev.astype(whh.dtype), whh,
                               preferred_element_type=jnp.float32)    # (B, 4H) f32
        # Gate order (i, f, o, g): one sigmoid over the contiguous 3H slab,
        # one tanh over the trailing H slab.
        ifo = jax.nn.sigmoid(gates[:, :3 * H])
        g_g = jnp.tanh(gates[:, 3 * H:])
        i_g = ifo[:, :H]
        f_g = ifo[:, H:2 * H]
        o_g = ifo[:, 2 * H:]
        c_new = f_g * c_prev + i_g * g_g
        h_new = o_g * jnp.tanh(c_new)
        return h_new, c_new

    zeros = jnp.zeros((batch, H), jnp.float32)

    # Step 0 peeled: h after the first step == states[0] in the PyTorch module.
    h_first, c = cell(xw[0:batch, :], zeros, zeros)
    h = h_first

    # Fully unrolled recurrence (static, small trip count) -> the scheduler sees
    # the whole chain and can overlap matmul pushes with the elementwise tails.
    for t in range(1, seq_len):
        h, c = cell(xw[t * batch:(t + 1) * batch, :], h, c)

    # TODO(synk): nn.Dropout is identity in eval mode; training-mode dropout not applied.
    # cat([states[0], states[-1]]) @ fc_W.T == h_first @ W0 + h_last @ W1
    logits = (jnp.dot(h_first, fcw_ref[0], preferred_element_type=jnp.float32)
              + jnp.dot(h, fcw_ref[1], preferred_element_type=jnp.float32)
              + fcb_ref[...])
    act = jnp.maximum(logits, 0.0)
    out_ref[...] = jax.nn.softmax(act, axis=1)


def lstm_forward(batch_ids, embed_matrix, wih, whh, b_ih, b_hh, fc_w, fc_b):
    """batch_ids: (B, S) int32 token indices. Returns (B, tagset) float32."""
    B, S = batch_ids.shape
    E = embed_matrix.shape[1]
    H = whh.shape[1]
    T = fc_w.shape[0]

    # Glue in plain JAX: frozen-embedding gather + permute([1,0,2]) + flatten.
    # TODO(synk): at scale, move this gather into the kernel via scalar prefetch.
    emb = jnp.take(embed_matrix, batch_ids, axis=0)            # (B, S, E)
    emb2d = jnp.transpose(emb, (1, 0, 2)).reshape(S * B, E)    # time-major, flat

    # Repack PyTorch-layout weights:
    #  * fuse the 4 gates into one lane-dense 4H axis,
    #  * reorder gates (i, f, g, o) -> (i, f, o, g),
    #  * fold b_ih + b_hh into a single bias row,
    #  * cast matmul operands to bf16 (f32 accumulation in the kernel).
    perm = jnp.array([0, 1, 3, 2], dtype=jnp.int32)
    wih_k = wih.reshape(4, H, E)[perm].transpose(2, 0, 1).reshape(E, 4 * H)
    whh_k = whh.reshape(4, H, H)[perm].transpose(2, 0, 1).reshape(H, 4 * H)
    b_k = (b_ih + b_hh).reshape(4, H)[perm].reshape(1, 4 * H).astype(jnp.float32)
    fcw_k = fc_w.T.reshape(2, H, T).astype(jnp.float32)        # [states[0], states[-1]]
    fcb_k = fc_b.reshape(1, T).astype(jnp.float32)

    emb2d = emb2d.astype(jnp.bfloat16)
    wih_k = wih_k.astype(jnp.bfloat16)
    whh_k = whh_k.astype(jnp.bfloat16)

    kernel = functools.partial(lstm_fc_kernel, seq_len=S, batch=B, hidden=H)
    out = pl.pallas_call(
        kernel,
        out_shape=jax.ShapeDtypeStruct((B, T), jnp.float32),
        in_specs=[pl.BlockSpec(memory_space=pltpu.MemorySpace.VMEM)] * 6,
        out_specs=pl.BlockSpec(memory_space=pltpu.MemorySpace.VMEM),
    )(emb2d, wih_k, whh_k, b_k, fcw_k, fcb_k)
    return out


if __name__ == "__main__":
    vocab_size = 16
    embed_size = 32
    num_hiddens = 32
    tagset_size = 4
    batch_size = 2
    seq_len = 8

    key = jax.random.PRNGKey(0)
    ks = jax.random.split(key, 8)

    embed_matrix = jax.random.normal(ks[0], (vocab_size, embed_size), jnp.float32)
    wih = 0.1 * jax.random.normal(ks[1], (4 * num_hiddens, embed_size), jnp.float32)
    whh = 0.1 * jax.random.normal(ks[2], (4 * num_hiddens, num_hiddens), jnp.float32)
    b_ih = 0.1 * jax.random.normal(ks[3], (4 * num_hiddens,), jnp.float32)
    b_hh = 0.1 * jax.random.normal(ks[4], (4 * num_hiddens,), jnp.float32)
    fc_w = 0.1 * jax.random.normal(ks[5], (tagset_size, 2 * num_hiddens), jnp.float32)
    fc_b = 0.1 * jax.random.normal(ks[6], (tagset_size,), jnp.float32)
    batch_ids = jax.random.randint(ks[7], (batch_size, seq_len), 0, vocab_size,
                                   dtype=jnp.int32)

    out = lstm_forward(batch_ids, embed_matrix, wih, whh, b_ih, b_hh, fc_w, fc_b)
    jax.block_until_ready(out)
    assert out.shape == (batch_size, tagset_size)
    print("KERNEL_OK")
</pallas_src>

<mosaic_0001>
module attributes {stable_mosaic.version = 11 : i64} {
  func.func @lstm_fc_kernel(%arg0: memref<16x32xbf16, #tpu.memory_space<vmem>>, %arg1: memref<32x128xbf16, #tpu.memory_space<vmem>>, %arg2: memref<32x128xbf16, #tpu.memory_space<vmem>>, %arg3: memref<1x128xf32, #tpu.memory_space<vmem>>, %arg4: memref<2x32x4xf32, #tpu.memory_space<vmem>>, %arg5: memref<1x4xf32, #tpu.memory_space<vmem>>, %arg6: memref<2x4xf32, #tpu.memory_space<vmem>>) attributes {dimension_semantics = [], scalar_prefetch = 0 : i64, scratch_operands = 0 : i64, tpu.core_type = #tpu.core_type<tc>} {
    %c0 = arith.constant 0 : index
    %c0_0 = arith.constant 0 : index
    %0 = vector.load %arg0[%c0, %c0_0] : memref<16x32xbf16, #tpu.memory_space<vmem>>, vector<16x32xbf16>
    %c0_1 = arith.constant 0 : index
    %c0_2 = arith.constant 0 : index
    %1 = vector.load %arg1[%c0_1, %c0_2] : memref<32x128xbf16, #tpu.memory_space<vmem>>, vector<32x128xbf16>
    %cst = arith.constant dense<0.000000e+00> : vector<16x128xf32>
    %2 = tpu.matmul %0, %1, %cst {dimension_numbers = #tpu.dot_dimension_numbers<[1], [0], [0], [1], [0, 0, 1, 1], [], []>} : vector<16x32xbf16>, vector<32x128xbf16>, vector<16x128xf32> -> vector<16x128xf32>
    %c0_3 = arith.constant 0 : index
    %c0_4 = arith.constant 0 : index
    %3 = vector.load %arg3[%c0_3, %c0_4] : memref<1x128xf32, #tpu.memory_space<vmem>>, vector<1x128xf32>
    %4 = vector.broadcast %3 : vector<1x128xf32> to vector<16x128xf32>
    %5 = arith.addf %2, %4 : vector<16x128xf32>
    %c0_5 = arith.constant 0 : index
    %c0_6 = arith.constant 0 : index
    %6 = vector.load %arg2[%c0_5, %c0_6] : memref<32x128xbf16, #tpu.memory_space<vmem>>, vector<32x128xbf16>
    %cst_7 = arith.constant 0.000000e+00 : f32
    %7 = vector.broadcast %cst_7 : f32 to vector<2x32xf32>
    %8 = vector.extract_strided_slice %5 {offsets = [0, 0], sizes = [2, 128], strides = [1, 1]} : vector<16x128xf32> to vector<2x128xf32>
    %9 = arith.truncf %7 : vector<2x32xf32> to vector<2x32xbf16>
    %cst_8 = arith.constant dense<0.000000e+00> : vector<2x128xf32>
    %10 = tpu.matmul %9, %6, %cst_8 {dimension_numbers = #tpu.dot_dimension_numbers<[1], [0], [0], [1], [0, 0, 1, 1], [], []>} : vector<2x32xbf16>, vector<32x128xbf16>, vector<2x128xf32> -> vector<2x128xf32>
    %11 = arith.addf %8, %10 : vector<2x128xf32>
    %12 = vector.extract_strided_slice %11 {offsets = [0, 0], sizes = [2, 96], strides = [1, 1]} : vector<2x128xf32> to vector<2x96xf32>
    %13 = arith.negf %12 : vector<2x96xf32>
    %14 = math.exp %13 : vector<2x96xf32>
    %cst_9 = arith.constant 1.000000e+00 : f32
    %15 = vector.broadcast %cst_9 : f32 to vector<2x96xf32>
    %16 = arith.addf %15, %14 : vector<2x96xf32>
    %17 = arith.divf %15, %16 : vector<2x96xf32>
    %18 = vector.extract_strided_slice %11 {offsets = [0, 96], sizes = [2, 32], strides = [1, 1]} : vector<2x128xf32> to vector<2x32xf32>
    %19 = math.tanh %18 : vector<2x32xf32>
    %20 = vector.extract_strided_slice %17 {offsets = [0, 0], sizes = [2, 32], strides = [1, 1]} : vector<2x96xf32> to vector<2x32xf32>
    %21 = vector.extract_strided_slice %17 {offsets = [0, 32], sizes = [2, 32], strides = [1, 1]} : vector<2x96xf32> to vector<2x32xf32>
    %22 = vector.extract_strided_slice %17 {offsets = [0, 64], sizes = [2, 32], strides = [1, 1]} : vector<2x96xf32> to vector<2x32xf32>
    %23 = arith.mulf %21, %7 : vector<2x32xf32>
    %24 = arith.mulf %20, %19 : vector<2x32xf32>
    %25 = arith.addf %23, %24 : vector<2x32xf32>
    %26 = math.tanh %25 : vector<2x32xf32>
    %27 = arith.mulf %22, %26 : vector<2x32xf32>
    %28 = vector.extract_strided_slice %5 {offsets = [2, 0], sizes = [2, 128], strides = [1, 1]} : vector<16x128xf32> to vector<2x128xf32>
    %29 = arith.truncf %27 : vector<2x32xf32> to vector<2x32xbf16>
    %cst_10 = arith.constant dense<0.000000e+00> : vector<2x128xf32>
    %30 = tpu.matmul %29, %6, %cst_10 {dimension_numbers = #tpu.dot_dimension_numbers<[1], [0], [0], [1], [0, 0, 1, 1], [], []>} : vector<2x32xbf16>, vector<32x128xbf16>, vector<2x128xf32> -> vector<2x128xf32>
    %31 = arith.addf %28, %30 : vector<2x128xf32>
    %32 = vector.extract_strided_slice %31 {offsets = [0, 0], sizes = [2, 96], strides = [1, 1]} : vector<2x128xf32> to vector<2x96xf32>
    %33 = arith.negf %32 : vector<2x96xf32>
    %34 = math.exp %33 : vector<2x96xf32>
    %cst_11 = arith.constant 1.000000e+00 : f32
    %35 = vector.broadcast %cst_11 : f32 to vector<2x96xf32>
    %36 = arith.addf %35, %34 : vector<2x96xf32>
    %37 = arith.divf %35, %36 : vector<2x96xf32>
    %38 = vector.extract_strided_slice %31 {offsets = [0, 96], sizes = [2, 32], strides = [1, 1]} : vector<2x128xf32> to vector<2x32xf32>
    %39 = math.tanh %38 : vector<2x32xf32>
    %40 = vector.extract_strided_slice %37 {offsets = [0, 0], sizes = [2, 32], strides = [1, 1]} : vector<2x96xf32> to vector<2x32xf32>
    %41 = vector.extract_strided_slice %37 {offsets = [0, 32], sizes = [2, 32], strides = [1, 1]} : vector<2x96xf32> to vector<2x32xf32>
    %42 = vector.extract_strided_slice %37 {offsets = [0, 64], sizes = [2, 32], strides = [1, 1]} : vector<2x96xf32> to vector<2x32xf32>
    %43 = arith.mulf %41, %25 : vector<2x32xf32>
    %44 = arith.mulf %40, %39 : vector<2x32xf32>
    %45 = arith.addf %43, %44 : vector<2x32xf32>
    %46 = math.tanh %45 : vector<2x32xf32>
    %47 = arith.mulf %42, %46 : vector<2x32xf32>
    %48 = vector.extract_strided_slice %5 {offsets = [4, 0], sizes = [2, 128], strides = [1, 1]} : vector<16x128xf32> to vector<2x128xf32>
    %49 = arith.truncf %47 : vector<2x32xf32> to vector<2x32xbf16>
    %cst_12 = arith.constant dense<0.000000e+00> : vector<2x128xf32>
    %50 = tpu.matmul %49, %6, %cst_12 {dimension_numbers = #tpu.dot_dimension_numbers<[1], [0], [0], [1], [0, 0, 1, 1], [], []>} : vector<2x32xbf16>, vector<32x128xbf16>, vector<2x128xf32> -> vector<2x128xf32>
    %51 = arith.addf %48, %50 : vector<2x128xf32>
    %52 = vector.extract_strided_slice %51 {offsets = [0, 0], sizes = [2, 96], strides = [1, 1]} : vector<2x128xf32> to vector<2x96xf32>
    %53 = arith.negf %52 : vector<2x96xf32>
    %54 = math.exp %53 : vector<2x96xf32>
    %cst_13 = arith.constant 1.000000e+00 : f32
    %55 = vector.broadcast %cst_13 : f32 to vector<2x96xf32>
    %56 = arith.addf %55, %54 : vector<2x96xf32>
    %57 = arith.divf %55, %56 : vector<2x96xf32>
    %58 = vector.extract_strided_slice %51 {offsets = [0, 96], sizes = [2, 32], strides = [1, 1]} : vector<2x128xf32> to vector<2x32xf32>
    %59 = math.tanh %58 : vector<2x32xf32>
    %60 = vector.extract_strided_slice %57 {offsets = [0, 0], sizes = [2, 32], strides = [1, 1]} : vector<2x96xf32> to vector<2x32xf32>
    %61 = vector.extract_strided_slice %57 {offsets = [0, 32], sizes = [2, 32], strides = [1, 1]} : vector<2x96xf32> to vector<2x32xf32>
    %62 = vector.extract_strided_slice %57 {offsets = [0, 64], sizes = [2, 32], strides = [1, 1]} : vector<2x96xf32> to vector<2x32xf32>
    %63 = arith.mulf %61, %45 : vector<2x32xf32>
    %64 = arith.mulf %60, %59 : vector<2x32xf32>
    %65 = arith.addf %63, %64 : vector<2x32xf32>
    %66 = math.tanh %65 : vector<2x32xf32>
    %67 = arith.mulf %62, %66 : vector<2x32xf32>
    %68 = vector.extract_strided_slice %5 {offsets = [6, 0], sizes = [2, 128], strides = [1, 1]} : vector<16x128xf32> to vector<2x128xf32>
    %69 = arith.truncf %67 : vector<2x32xf32> to vector<2x32xbf16>
    %cst_14 = arith.constant dense<0.000000e+00> : vector<2x128xf32>
    %70 = tpu.matmul %69, %6, %cst_14 {dimension_numbers = #tpu.dot_dimension_numbers<[1], [0], [0], [1], [0, 0, 1, 1], [], []>} : vector<2x32xbf16>, vector<32x128xbf16>, vector<2x128xf32> -> vector<2x128xf32>
    %71 = arith.addf %68, %70 : vector<2x128xf32>
    %72 = vector.extract_strided_slice %71 {offsets = [0, 0], sizes = [2, 96], strides = [1, 1]} : vector<2x128xf32> to vector<2x96xf32>
    %73 = arith.negf %72 : vector<2x96xf32>
    %74 = math.exp %73 : vector<2x96xf32>
    %cst_15 = arith.constant 1.000000e+00 : f32
    %75 = vector.broadcast %cst_15 : f32 to vector<2x96xf32>
    %76 = arith.addf %75, %74 : vector<2x96xf32>
    %77 = arith.divf %75, %76 : vector<2x96xf32>
    %78 = vector.extract_strided_slice %71 {offsets = [0, 96], sizes = [2, 32], strides = [1, 1]} : vector<2x128xf32> to vector<2x32xf32>
    %79 = math.tanh %78 : vector<2x32xf32>
    %80 = vector.extract_strided_slice %77 {offsets = [0, 0], sizes = [2, 32], strides = [1, 1]} : vector<2x96xf32> to vector<2x32xf32>
    %81 = vector.extract_strided_slice %77 {offsets = [0, 32], sizes = [2, 32], strides = [1, 1]} : vector<2x96xf32> to vector<2x32xf32>
    %82 = vector.extract_strided_slice %77 {offsets = [0, 64], sizes = [2, 32], strides = [1, 1]} : vector<2x96xf32> to vector<2x32xf32>
    %83 = arith.mulf %81, %65 : vector<2x32xf32>
    %84 = arith.mulf %80, %79 : vector<2x32xf32>
    %85 = arith.addf %83, %84 : vector<2x32xf32>
    %86 = math.tanh %85 : vector<2x32xf32>
    %87 = arith.mulf %82, %86 : vector<2x32xf32>
    %88 = vector.extract_strided_slice %5 {offsets = [8, 0], sizes = [2, 128], strides = [1, 1]} : vector<16x128xf32> to vector<2x128xf32>
    %89 = arith.truncf %87 : vector<2x32xf32> to vector<2x32xbf16>
    %cst_16 = arith.constant dense<0.000000e+00> : vector<2x128xf32>
    %90 = tpu.matmul %89, %6, %cst_16 {dimension_numbers = #tpu.dot_dimension_numbers<[1], [0], [0], [1], [0, 0, 1, 1], [], []>} : vector<2x32xbf16>, vector<32x128xbf16>, vector<2x128xf32> -> vector<2x128xf32>
    %91 = arith.addf %88, %90 : vector<2x128xf32>
    %92 = vector.extract_strided_slice %91 {offsets = [0, 0], sizes = [2, 96], strides = [1, 1]} : vector<2x128xf32> to vector<2x96xf32>
    %93 = arith.negf %92 : vector<2x96xf32>
    %94 = math.exp %93 : vector<2x96xf32>
    %cst_17 = arith.constant 1.000000e+00 : f32
    %95 = vector.broadcast %cst_17 : f32 to vector<2x96xf32>
    %96 = arith.addf %95, %94 : vector<2x96xf32>
    %97 = arith.divf %95, %96 : vector<2x96xf32>
    %98 = vector.extract_strided_slice %91 {offsets = [0, 96], sizes = [2, 32], strides = [1, 1]} : vector<2x128xf32> to vector<2x32xf32>
    %99 = math.tanh %98 : vector<2x32xf32>
    %100 = vector.extract_strided_slice %97 {offsets = [0, 0], sizes = [2, 32], strides = [1, 1]} : vector<2x96xf32> to vector<2x32xf32>
    %101 = vector.extract_strided_slice %97 {offsets = [0, 32], sizes = [2, 32], strides = [1, 1]} : vector<2x96xf32> to vector<2x32xf32>
    %102 = vector.extract_strided_slice %97 {offsets = [0, 64], sizes = [2, 32], strides = [1, 1]} : vector<2x96xf32> to vector<2x32xf32>
    %103 = arith.mulf %101, %85 : vector<2x32xf32>
    %104 = arith.mulf %100, %99 : vector<2x32xf32>
    %105 = arith.addf %103, %104 : vector<2x32xf32>
    %106 = math.tanh %105 : vector<2x32xf32>
    %107 = arith.mulf %102, %106 : vector<2x32xf32>
    %108 = vector.extract_strided_slice %5 {offsets = [10, 0], sizes = [2, 128], strides = [1, 1]} : vector<16x128xf32> to vector<2x128xf32>
    %109 = arith.truncf %107 : vector<2x32xf32> to vector<2x32xbf16>
    %cst_18 = arith.constant dense<0.000000e+00> : vector<2x128xf32>
    %110 = tpu.matmul %109, %6, %cst_18 {dimension_numbers = #tpu.dot_dimension_numbers<[1], [0], [0], [1], [0, 0, 1, 1], [], []>} : vector<2x32xbf16>, vector<32x128xbf16>, vector<2x128xf32> -> vector<2x128xf32>
    %111 = arith.addf %108, %110 : vector<2x128xf32>
    %112 = vector.extract_strided_slice %111 {offsets = [0, 0], sizes = [2, 96], strides = [1, 1]} : vector<2x128xf32> to vector<2x96xf32>
    %113 = arith.negf %112 : vector<2x96xf32>
    %114 = math.exp %113 : vector<2x96xf32>
    %cst_19 = arith.constant 1.000000e+00 : f32
    %115 = vector.broadcast %cst_19 : f32 to vector<2x96xf32>
    %116 = arith.addf %115, %114 : vector<2x96xf32>
    %117 = arith.divf %115, %116 : vector<2x96xf32>
    %118 = vector.extract_strided_slice %111 {offsets = [0, 96], sizes = [2, 32], strides = [1, 1]} : vector<2x128xf32> to vector<2x32xf32>
    %119 = math.tanh %118 : vector<2x32xf32>
    %120 = vector.extract_strided_slice %117 {offsets = [0, 0], sizes = [2, 32], strides = [1, 1]} : vector<2x96xf32> to vector<2x32xf32>
    %121 = vector.extract_strided_slice %117 {offsets = [0, 32], sizes = [2, 32], strides = [1, 1]} : vector<2x96xf32> to vector<2x32xf32>
    %122 = vector.extract_strided_slice %117 {offsets = [0, 64], sizes = [2, 32], strides = [1, 1]} : vector<2x96xf32> to vector<2x32xf32>
    %123 = arith.mulf %121, %105 : vector<2x32xf32>
    %124 = arith.mulf %120, %119 : vector<2x32xf32>
    %125 = arith.addf %123, %124 : vector<2x32xf32>
    %126 = math.tanh %125 : vector<2x32xf32>
    %127 = arith.mulf %122, %126 : vector<2x32xf32>
    %128 = vector.extract_strided_slice %5 {offsets = [12, 0], sizes = [2, 128], strides = [1, 1]} : vector<16x128xf32> to vector<2x128xf32>
    %129 = arith.truncf %127 : vector<2x32xf32> to vector<2x32xbf16>
    %cst_20 = arith.constant dense<0.000000e+00> : vector<2x128xf32>
    %130 = tpu.matmul %129, %6, %cst_20 {dimension_numbers = #tpu.dot_dimension_numbers<[1], [0], [0], [1], [0, 0, 1, 1], [], []>} : vector<2x32xbf16>, vector<32x128xbf16>, vector<2x128xf32> -> vector<2x128xf32>
    %131 = arith.addf %128, %130 : vector<2x128xf32>
    %132 = vector.extract_strided_slice %131 {offsets = [0, 0], sizes = [2, 96], strides = [1, 1]} : vector<2x128xf32> to vector<2x96xf32>
    %133 = arith.negf %132 : vector<2x96xf32>
    %134 = math.exp %133 : vector<2x96xf32>
    %cst_21 = arith.constant 1.000000e+00 : f32
    %135 = vector.broadcast %cst_21 : f32 to vector<2x96xf32>
    %136 = arith.addf %135, %134 : vector<2x96xf32>
    %137 = arith.divf %135, %136 : vector<2x96xf32>
    %138 = vector.extract_strided_slice %131 {offsets = [0, 96], sizes = [2, 32], strides = [1, 1]} : vector<2x128xf32> to vector<2x32xf32>
    %139 = math.tanh %138 : vector<2x32xf32>
    %140 = vector.extract_strided_slice %137 {offsets = [0, 0], sizes = [2, 32], strides = [1, 1]} : vector<2x96xf32> to vector<2x32xf32>
    %141 = vector.extract_strided_slice %137 {offsets = [0, 32], sizes = [2, 32], strides = [1, 1]} : vector<2x96xf32> to vector<2x32xf32>
    %142 = vector.extract_strided_slice %137 {offsets = [0, 64], sizes = [2, 32], strides = [1, 1]} : vector<2x96xf32> to vector<2x32xf32>
    %143 = arith.mulf %141, %125 : vector<2x32xf32>
    %144 = arith.mulf %140, %139 : vector<2x32xf32>
    %145 = arith.addf %143, %144 : vector<2x32xf32>
    %146 = math.tanh %145 : vector<2x32xf32>
    %147 = arith.mulf %142, %146 : vector<2x32xf32>
    %148 = vector.extract_strided_slice %5 {offsets = [14, 0], sizes = [2, 128], strides = [1, 1]} : vector<16x128xf32> to vector<2x128xf32>
    %149 = arith.truncf %147 : vector<2x32xf32> to vector<2x32xbf16>
    %cst_22 = arith.constant dense<0.000000e+00> : vector<2x128xf32>
    %150 = tpu.matmul %149, %6, %cst_22 {dimension_numbers = #tpu.dot_dimension_numbers<[1], [0], [0], [1], [0, 0, 1, 1], [], []>} : vector<2x32xbf16>, vector<32x128xbf16>, vector<2x128xf32> -> vector<2x128xf32>
    %151 = arith.addf %148, %150 : vector<2x128xf32>
    %152 = vector.extract_strided_slice %151 {offsets = [0, 0], sizes = [2, 96], strides = [1, 1]} : vector<2x128xf32> to vector<2x96xf32>
    %153 = arith.negf %152 : vector<2x96xf32>
    %154 = math.exp %153 : vector<2x96xf32>
    %cst_23 = arith.constant 1.000000e+00 : f32
    %155 = vector.broadcast %cst_23 : f32 to vector<2x96xf32>
    %156 = arith.addf %155, %154 : vector<2x96xf32>
    %157 = arith.divf %155, %156 : vector<2x96xf32>
    %158 = vector.extract_strided_slice %151 {offsets = [0, 96], sizes = [2, 32], strides = [1, 1]} : vector<2x128xf32> to vector<2x32xf32>
    %159 = math.tanh %158 : vector<2x32xf32>
    %160 = vector.extract_strided_slice %157 {offsets = [0, 0], sizes = [2, 32], strides = [1, 1]} : vector<2x96xf32> to vector<2x32xf32>
    %161 = vector.extract_strided_slice %157 {offsets = [0, 32], sizes = [2, 32], strides = [1, 1]} : vector<2x96xf32> to vector<2x32xf32>
    %162 = vector.extract_strided_slice %157 {offsets = [0, 64], sizes = [2, 32], strides = [1, 1]} : vector<2x96xf32> to vector<2x32xf32>
    %163 = arith.mulf %161, %145 : vector<2x32xf32>
    %164 = arith.mulf %160, %159 : vector<2x32xf32>
    %165 = arith.addf %163, %164 : vector<2x32xf32>
    %166 = math.tanh %165 : vector<2x32xf32>
    %167 = arith.mulf %162, %166 : vector<2x32xf32>
    %c0_24 = arith.constant 0 : index
    %c0_25 = arith.constant 0 : index
    %c0_26 = arith.constant 0 : index
    %168 = vector.load %arg4[%c0_24, %c0_25, %c0_26] : memref<2x32x4xf32, #tpu.memory_space<vmem>>, vector<1x32x4xf32>
    %169 = vector.shape_cast %168 : vector<1x32x4xf32> to vector<32x4xf32>
    %cst_27 = arith.constant dense<0.000000e+00> : vector<2x4xf32>
    %170 = tpu.matmul %27, %169, %cst_27 {dimension_numbers = #tpu.dot_dimension_numbers<[1], [0], [0], [1], [0, 0, 1, 1], [], []>} : vector<2x32xf32>, vector<32x4xf32>, vector<2x4xf32> -> vector<2x4xf32>
    %c1 = arith.constant 1 : index
    %c0_28 = arith.constant 0 : index
    %c0_29 = arith.constant 0 : index
    %171 = vector.load %arg4[%c1, %c0_28, %c0_29] : memref<2x32x4xf32, #tpu.memory_space<vmem>>, vector<1x32x4xf32>
    %172 = vector.shape_cast %171 : vector<1x32x4xf32> to vector<32x4xf32>
    %cst_30 = arith.constant dense<0.000000e+00> : vector<2x4xf32>
    %173 = tpu.matmul %167, %172, %cst_30 {dimension_numbers = #tpu.dot_dimension_numbers<[1], [0], [0], [1], [0, 0, 1, 1], [], []>} : vector<2x32xf32>, vector<32x4xf32>, vector<2x4xf32> -> vector<2x4xf32>
    %174 = arith.addf %170, %173 : vector<2x4xf32>
    %c0_31 = arith.constant 0 : index
    %c0_32 = arith.constant 0 : index
    %175 = vector.load %arg5[%c0_31, %c0_32] : memref<1x4xf32, #tpu.memory_space<vmem>>, vector<1x4xf32>
    %176 = vector.broadcast %175 : vector<1x4xf32> to vector<2x4xf32>
    %177 = arith.addf %174, %176 : vector<2x4xf32>
    %cst_33 = arith.constant 0.000000e+00 : f32
    %178 = vector.broadcast %cst_33 : f32 to vector<2x4xf32>
    %179 = arith.maximumf %177, %178 : vector<2x4xf32>
    %cst_34 = arith.constant dense<0xFF800000> : vector<2xf32>
    %180 = vector.multi_reduction <maximumf>, %179, %cst_34 [1] : vector<2x4xf32> to vector<2xf32>
    %cst_35 = arith.constant 0xFF800000 : f32
    %181 = vector.broadcast %cst_35 : f32 to vector<2xf32>
    %182 = arith.maximumf %181, %180 : vector<2xf32>
    %183 = vector.shape_cast %182 : vector<2xf32> to vector<2x1xf32>
    %184 = vector.broadcast %183 : vector<2x1xf32> to vector<2x4xf32>
    %185 = arith.subf %179, %184 : vector<2x4xf32>
    %186 = math.exp %185 : vector<2x4xf32>
    %cst_36 = arith.constant dense<0.000000e+00> : vector<2xf32>
    %187 = vector.multi_reduction <add>, %186, %cst_36 [1] : vector<2x4xf32> to vector<2xf32>
    %188 = vector.shape_cast %187 : vector<2xf32> to vector<2x1xf32>
    %189 = vector.broadcast %188 : vector<2x1xf32> to vector<2x4xf32>
    %190 = arith.divf %186, %189 : vector<2x4xf32>
    %c0_37 = arith.constant 0 : index
    %c0_38 = arith.constant 0 : index
    %191 = vector.load %arg6[%c0_37, %c0_38] : memref<2x4xf32, #tpu.memory_space<vmem>>, vector<2x4xf32>
    tpu.vector_store %arg6[%c0_37, %c0_38], %190 {strides = array<i32>} : memref<2x4xf32, #tpu.memory_space<vmem>>, vector<2x4xf32>,
    return
  }
}

</mosaic_0001>

<llo_original>
// kernel: tpu_custom_call.1
$region0: #{tpu_custom_call.1}
  #allocation0 [shape = 'u32[]', space=smem, size = 0x4, offset = 0x4, fixed_abs, tag = 'smem constant byte address 0x4 - core index']
  #allocation1 [shape = 'u32[144,128]{1,0:T(1,128)}', space=vmem, size = 0x12000, scoped, tag = 'internal scratch']
  %s0 = inlined_call_operand.vmem [shape: bf16[16,32], index: 0, kind: input, shape index: {}]
  %s1 = inlined_call_operand.vmem [shape: bf16[32,128], index: 1, kind: input, shape index: {}]
  %s2 = inlined_call_operand.vmem [shape: bf16[32,128], index: 2, kind: input, shape index: {}]
  %s3 = inlined_call_operand.vmem [shape: f32[1,128], index: 3, kind: input, shape index: {}]
  %s4 = inlined_call_operand.vmem [shape: f32[2,32,4], index: 4, kind: input, shape index: {}]
  %s5 = inlined_call_operand.vmem [shape: f32[1,4], index: 5, kind: input, shape index: {}]
  %s6 = inlined_call_operand.hbm [shape: f32[2,4], index: 6, kind: output, shape index: {}]
  %s7 = sld [smem:[#allocation0]]
  $region34: #{tpu_custom_call.1} parent=0
    _
  %s9 = ssub.s32 1, %s7
  %s10 = scalar_select 0, %s9, %s7
  $region1: #{tpu_custom_call.1} parent=0
    #allocation2 [shape = 'u8[1024]{0}', space=vmem, size = 0x400, scoped, tag = 'output window, operand 0, single buffered']
    #allocation3 [shape = 's32[1]{0}', space=sflag, size = 0x4, scoped, tag = 'scoped memory for tpu_custom_call.1']
    %11 = vsyncpa [#allocation3], 0
    // Predicated region
    $region2: #{tpu_custom_call.1} parent=1 // pred_check
      _
    $region3: #{tpu_custom_call.1} parent=1 // pred_check_branch
      %13 = sbr.rel (0) target = $region5
    $region4: #{tpu_custom_call.1} parent=1 // pred_region
      _
    $region5: #{tpu_custom_call.1} parent=1 // pred_fallthru
      _
    // Predicated region
    $region6: #{tpu_custom_call.1} parent=1 // pred_check
      _
    $region7: #{tpu_custom_call.1} parent=1 // pred_check_branch
      %15 = sbr.rel (0) target = $region9
    $region8: #{tpu_custom_call.1} parent=1 // pred_region
      _
    $region9: #{tpu_custom_call.1} parent=1 // pred_fallthru
      _
    // Predicated region
    $region10: #{tpu_custom_call.1} parent=1 // pred_check
      _
    $region11: #{tpu_custom_call.1} parent=1 // pred_check_branch
      %17 = sbr.rel (0) target = $region13
    $region12: #{tpu_custom_call.1} parent=1 // pred_region
      _
    $region13: #{tpu_custom_call.1} parent=1 // pred_fallthru
      _
    // Predicated region
    $region14: #{tpu_custom_call.1} parent=1 // pred_check
      _
    $region15: #{tpu_custom_call.1} parent=1 // pred_check_branch
      %19 = sbr.rel (0) target = $region17
    $region16: #{tpu_custom_call.1} parent=1 // pred_region
      _
    $region17: #{tpu_custom_call.1} parent=1 // pred_fallthru
      _
    // Predicated region
    $region18: #{tpu_custom_call.1} parent=1 // pred_check
      _
    $region19: #{tpu_custom_call.1} parent=1 // pred_check_branch
      %21 = sbr.rel (0) target = $region21
    $region20: #{tpu_custom_call.1} parent=1 // pred_region
      _
    $region21: #{tpu_custom_call.1} parent=1 // pred_fallthru
      _
    // Predicated region
    $region22: #{tpu_custom_call.1} parent=1 // pred_check
      _
    $region23: #{tpu_custom_call.1} parent=1 // pred_check_branch
      %23 = sbr.rel (0) target = $region25
    $region24: #{tpu_custom_call.1} parent=1 // pred_region
      _
    $region25: #{tpu_custom_call.1} parent=1 // pred_fallthru
      _
    %v25 = vld [vmem:[%s0] sm:$0xf]
    %v26 = vld [vmem:[%s0 + $0x4] sm:$0xf]
    %v27 = vld [vmem:[%s1] sm:$0xf]
    %v28 = vld [vmem:[%s1 + $0x4] sm:$0xf]
    %v29 = vld [vmem:[%s1 + $0x8] sm:$0xf]
    %v30 = vld [vmem:[%s1 + $0xc] sm:$0xf]
    %v31 = vld [vmem:[%s3] sm:$0x1]
    %v33 = vlaneseq
    %v34 = vshrl.u32 %v33, 7
    %v35 = vsub.s32 0, %v34
    %v36 = vrot.slane %v31, %v35
    %v40 = vunpack.c.l.b16 %v25
    %v41 = vunpack.c.l.b16 %v26
    %v42 = vpack.c.b16 %v41, %v40
    %v47 = vunpack.c.l.b16 %v27
    %v48 = vunpack.c.l.b16 %v28
    %v49 = vunpack.c.l.b16 %v29
    %v50 = vunpack.c.l.b16 %v30
    %v51 = vpack.c.b16 %v48, %v47
    %v52 = vpack.c.b16 %v50, %v49
    %vm55 = vcmask 261120
    %v57 = vsel %vm55, %v42, 0
    %59 = vmatprep.subr.bf16.mxu0 0
    %60 = vmatpush1.bf16.msra.mxu0 0
    %61 = vmatprep.subr.bf16.mxu0 0
    %62 = vmatpush1.bf16.msra.mxu0 0
    %63 = vmatprep.subr.bf16.mxu0 0
    %64 = vmatpush1.bf16.msra.mxu0 0
    %65 = vmatprep.subr.bf16.mxu0 0
    %66 = vmatpush1.bf16.msra.mxu0 0
    %67 = vmatprep.subr.bf16.mxu0 0
    %68 = vmatpush1.bf16.msra.mxu0 0
    %69 = vmatprep.subr.bf16.mxu0 0
    %70 = vmatpush1.bf16.msra.mxu0 0
    %71 = vmatprep.subr.bf16.mxu0 0
    %72 = vmatpush1.bf16.msra.mxu0 %v52
    %73 = vmatprep.subr.bf16.mxu0 0
    %74 = vmatpush1.bf16.msra.mxu0 %v51
    %75 = vmatprep.subr.bf16.mxu0 0
    %76 = vmatpush2.bf16.msra.mxu0 0
    %77 = vmatprep.subr.bf16.mxu0 0
    %78 = vmatpush2.bf16.msra.mxu0 0
    %79 = vmatprep.subr.bf16.mxu0 0
    %80 = vmatpush2.bf16.msra.mxu0 0
    %81 = vmatprep.subr.bf16.mxu0 0
    %82 = vmatpush2.bf16.msra.mxu0 0
    %83 = vmatprep.subr.bf16.mxu0 0
    %84 = vmatpush2.bf16.msra.mxu0 0
    %85 = vmatprep.subr.bf16.mxu0 0
    %86 = vmatpush2.bf16.msra.mxu0 0
    %87 = vmatprep.subr.bf16.mxu0 0
    %88 = vmatpush2.bf16.msra.mxu0 0
    %89 = vmatprep.subr.bf16.mxu0 0
    %90 = vmatpush2.bf16.msra.mxu0 0
    %91 = vmatprep.mubr.bf16.mxu0 0
    %92 = vmatmul.mubr.bf16.gmra.mxu0 %v57
    %v93 = vpop.f32.mrf.mxu0
    %v94 = vadd.f32 %v36, %v93
    %v95 = vpop.f32.mrf.mxu0
    %v96 = vpop.f32.mrf.mxu0
    %v97 = vadd.f32 %v36, %v96
    %v98 = vpop.f32.mrf.mxu0
    %99 = vdwg.mxu0
    %v100 = vld [vmem:[%s2] sm:$0xf]
    %v101 = vld [vmem:[%s2 + $0x4] sm:$0xf]
    %v102 = vld [vmem:[%s2 + $0x8] sm:$0xf]
    %v103 = vld [vmem:[%s2 + $0xc] sm:$0xf]
    %v108 = vunpack.c.l.b16 %v100
    %v109 = vunpack.c.l.b16 %v101
    %v110 = vunpack.c.l.b16 %v102
    %v111 = vunpack.c.l.b16 %v103
    %v112 = vpack.c.b16 %v109, %v108
    %v113 = vpack.c.b16 %v111, %v110
    %v117 = vsel %vm55, 0, 0
    %119 = vmatprep.subr.bf16.mxu0 0
    %120 = vmatpush1.bf16.msra.mxu0 0
    %121 = vmatprep.subr.bf16.mxu0 0
    %122 = vmatpush1.bf16.msra.mxu0 0
    %123 = vmatprep.subr.bf16.mxu0 0
    %124 = vmatpush1.bf16.msra.mxu0 0
    %125 = vmatprep.subr.bf16.mxu0 0
    %126 = vmatpush1.bf16.msra.mxu0 0
    %127 = vmatprep.subr.bf16.mxu0 0
    %128 = vmatpush1.bf16.msra.mxu0 0
    %129 = vmatprep.subr.bf16.mxu0 0
    %130 = vmatpush1.bf16.msra.mxu0 0
    %131 = vmatprep.subr.bf16.mxu0 0
    %132 = vmatpush1.bf16.msra.mxu0 %v113
    %133 = vmatprep.subr.bf16.mxu0 0
    %134 = vmatpush1.bf16.msra.mxu0 %v112
    %135 = vmatprep.subr.bf16.mxu0 0
    %136 = vmatpush2.bf16.msra.mxu0 0
    %137 = vmatprep.subr.bf16.mxu0 0
    %138 = vmatpush2.bf16.msra.mxu0 0
    %139 = vmatprep.subr.bf16.mxu0 0
    %140 = vmatpush2.bf16.msra.mxu0 0
    %141 = vmatprep.subr.bf16.mxu0 0
    %142 = vmatpush2.bf16.msra.mxu0 0
    %143 = vmatprep.subr.bf16.mxu0 0
    %144 = vmatpush2.bf16.msra.mxu0 0
    %145 = vmatprep.subr.bf16.mxu0 0
    %146 = vmatpush2.bf16.msra.mxu0 0
    %147 = vmatprep.subr.bf16.mxu0 0
    %148 = vmatpush2.bf16.msra.mxu0 0
    %149 = vmatprep.subr.bf16.mxu0 0
    %150 = vmatpush2.bf16.msra.mxu0 0
    %151 = vmatprep.mubr.bf16.mxu0 0
    %152 = vmatmul.mubr.bf16.gmra.mxu0 %v117
    %v153 = vpop.f32.mrf.mxu0
    %v154 = vadd.f32 0.0, %v153
    %v155 = vpop.f32.mrf.mxu0
    %v156 = vpop.f32.mrf.mxu0
    %v157 = vpop.f32.mrf.mxu0
    %158 = vdwg.mxu0
    %v159 = vadd.f32 %v94, %v154
    %v160 = vxor.u32 %v159, 2147483648
    %v161 = vmul.f32 %v160, 1.442695
    %v162 = vpow.pop %v161
    %v163 = vadd.f32 %v162, 1.0
    %v164 = vrcp.pop %v163
    %v165 = vmul.f32 1.0, %v164
    %v166 = vtanh.pop %v159
    %v167 = vmul.f32 %v165, 0.0
    %169 = vrot.lane.b32.xlu0 %v166, 32
    %v170 = vpop.permute.xlu0 %169
    %v172 = vmul.f32 %v165, %v170
    %174 = vrot.lane.b32.xlu0 %v172, 32
    %v175 = vpop.permute.xlu0 %174
    %v177 = vadd.f32 %v167, %v175
    %v178 = vtanh.pop %v177
    %180 = vrot.lane.b32.xlu0 %v178, 32
    %v181 = vpop.permute.xlu0 %180
    %v183 = vmul.f32 %v165, %v181
    %v184 = vpack.c.bf16 %v183, %v183
    %186 = vrot.lane.b32.xlu0 %v184, 64
    %v187 = vpop.permute.xlu0 %186
    %v189 = vsel %vm55, %v187, 0
    %191 = vmatprep.subr.bf16.mxu0 0
    %192 = vmatpush1.bf16.msra.mxu0 0
    %193 = vmatprep.subr.bf16.mxu0 0
    %194 = vmatpush1.bf16.msra.mxu0 0
    %195 = vmatprep.subr.bf16.mxu0 0
    %196 = vmatpush1.bf16.msra.mxu0 0
    %197 = vmatprep.subr.bf16.mxu0 0
    %198 = vmatpush1.bf16.msra.mxu0 0
    %199 = vmatprep.subr.bf16.mxu0 0
    %200 = vmatpush1.bf16.msra.mxu0 0
    %201 = vmatprep.subr.bf16.mxu0 0
    %202 = vmatpush1.bf16.msra.mxu0 0
    %203 = vmatprep.subr.bf16.mxu0 0
    %204 = vmatpush1.bf16.msra.mxu0 %v113
    %205 = vmatprep.subr.bf16.mxu0 0
    %206 = vmatpush1.bf16.msra.mxu0 %v112
    %207 = vmatprep.subr.bf16.mxu0 0
    %208 = vmatpush2.bf16.msra.mxu0 0
    %209 = vmatprep.subr.bf16.mxu0 0
    %210 = vmatpush2.bf16.msra.mxu0 0
    %211 = vmatprep.subr.bf16.mxu0 0
    %212 = vmatpush2.bf16.msra.mxu0 0
    %213 = vmatprep.subr.bf16.mxu0 0
    %214 = vmatpush2.bf16.msra.mxu0 0
    %215 = vmatprep.subr.bf16.mxu0 0
    %216 = vmatpush2.bf16.msra.mxu0 0
    %217 = vmatprep.subr.bf16.mxu0 0
    %218 = vmatpush2.bf16.msra.mxu0 0
    %219 = vmatprep.subr.bf16.mxu0 0
    %220 = vmatpush2.bf16.msra.mxu0 0
    %221 = vmatprep.subr.bf16.mxu0 0
    %222 = vmatpush2.bf16.msra.mxu0 0
    %223 = vmatprep.mubr.bf16.mxu0 0
    %224 = vmatmul.mubr.bf16.gmra.mxu0 %v189
    %v225 = vpop.f32.mrf.mxu0
    %v226 = vadd.f32 0.0, %v225
    %v227 = vpop.f32.mrf.mxu0
    %v228 = vpop.f32.mrf.mxu0
    %v229 = vpop.f32.mrf.mxu0
    %230 = vdwg.mxu0
    %v232 = vrot.slane %v226, 6
    %v234 = vadd.f32 %v94, %v232
    %v235 = vxor.u32 %v234, 2147483648
    %v236 = vmul.f32 %v235, 1.442695
    %v237 = vpow.pop %v236
    %v238 = vadd.f32 %v237, 1.0
    %v239 = vrcp.pop %v238
    %v240 = vmul.f32 1.0, %v239
    %v241 = vtanh.pop %v234
    %v243 = vrot.slane %v177, 6
    %v245 = vmul.f32 %v240, %v243
    %247 = vrot.lane.b32.xlu0 %v241, 32
    %v248 = vpop.permute.xlu0 %247
    %v250 = vmul.f32 %v240, %v248
    %252 = vrot.lane.b32.xlu0 %v250, 32
    %v253 = vpop.permute.xlu0 %252
    %v255 = vadd.f32 %v245, %v253
    %v256 = vtanh.pop %v255
    %258 = vrot.lane.b32.xlu0 %v256, 32
    %v259 = vpop.permute.xlu0 %258
    %v261 = vmul.f32 %v240, %v259
    %v262 = vpack.c.bf16 %v261, %v261
    %v264 = vrot.slane %v262, 1
    %265 = vrot.lane.b32.xlu0 %v264, 64
    %v266 = vpop.permute.xlu0 %265
    %v268 = vsel %vm55, %v266, 0
    %270 = vmatprep.subr.bf16.mxu0 0
    %271 = vmatpush1.bf16.msra.mxu0 0
    %272 = vmatprep.subr.bf16.mxu0 0
    %273 = vmatpush1.bf16.msra.mxu0 0
    %274 = vmatprep.subr.bf16.mxu0 0
    %275 = vmatpush1.bf16.msra.mxu0 0
    %276 = vmatprep.subr.bf16.mxu0 0
    %277 = vmatpush1.bf16.msra.mxu0 0
    %278 = vmatprep.subr.bf16.mxu0 0
    %279 = vmatpush1.bf16.msra.mxu0 0
    %280 = vmatprep.subr.bf16.mxu0 0
    %281 = vmatpush1.bf16.msra.mxu0 0
    %282 = vmatprep.subr.bf16.mxu0 0
    %283 = vmatpush1.bf16.msra.mxu0 %v113
    %284 = vmatprep.subr.bf16.mxu0 0
    %285 = vmatpush1.bf16.msra.mxu0 %v112
    %286 = vmatprep.subr.bf16.mxu0 0
    %287 = vmatpush2.bf16.msra.mxu0 0
    %288 = vmatprep.subr.bf16.mxu0 0
    %289 = vmatpush2.bf16.msra.mxu0 0
    %290 = vmatprep.subr.bf16.mxu0 0
    %291 = vmatpush2.bf16.msra.mxu0 0
    %292 = vmatprep.subr.bf16.mxu0 0
    %293 = vmatpush2.bf16.msra.mxu0 0
    %294 = vmatprep.subr.bf16.mxu0 0
    %295 = vmatpush2.bf16.msra.mxu0 0
    %296 = vmatprep.subr.bf16.mxu0 0
    %297 = vmatpush2.bf16.msra.mxu0 0
    %298 = vmatprep.subr.bf16.mxu0 0
    %299 = vmatpush2.bf16.msra.mxu0 0
    %300 = vmatprep.subr.bf16.mxu0 0
    %301 = vmatpush2.bf16.msra.mxu0 0
    %302 = vmatprep.mubr.bf16.mxu0 0
    %303 = vmatmul.mubr.bf16.gmra.mxu0 %v268
    %v304 = vpop.f32.mrf.mxu0
    %v305 = vadd.f32 0.0, %v304
    %v306 = vpop.f32.mrf.mxu0
    %v307 = vpop.f32.mrf.mxu0
    %v308 = vpop.f32.mrf.mxu0
    %309 = vdwg.mxu0
    %v311 = vrot.slane %v305, 4
    %v313 = vadd.f32 %v94, %v311
    %v314 = vxor.u32 %v313, 2147483648
    %v315 = vmul.f32 %v314, 1.442695
    %v316 = vpow.pop %v315
    %v317 = vadd.f32 %v316, 1.0
    %v318 = vrcp.pop %v317
    %v319 = vmul.f32 1.0, %v318
    %v320 = vtanh.pop %v313
    %v322 = vrot.slane %v255, 6
    %v324 = vmul.f32 %v319, %v322
    %326 = vrot.lane.b32.xlu0 %v320, 32
    %v327 = vpop.permute.xlu0 %326
    %v329 = vmul.f32 %v319, %v327
    %331 = vrot.lane.b32.xlu0 %v329, 32
    %v332 = vpop.permute.xlu0 %331
    %v334 = vadd.f32 %v324, %v332
    %v335 = vtanh.pop %v334
    %337 = vrot.lane.b32.xlu0 %v335, 32
    %v338 = vpop.permute.xlu0 %337
    %v340 = vmul.f32 %v319, %v338
    %v341 = vpack.c.bf16 %v340, %v340
    %v343 = vrot.slane %v341, 2
    %344 = vrot.lane.b32.xlu0 %v343, 64
    %v345 = vpop.permute.xlu0 %344
    %v347 = vsel %vm55, %v345, 0
    %349 = vmatprep.subr.bf16.mxu0 0
    %350 = vmatpush1.bf16.msra.mxu0 0
    %351 = vmatprep.subr.bf16.mxu0 0
    %352 = vmatpush1.bf16.msra.mxu0 0
    %353 = vmatprep.subr.bf16.mxu0 0
    %354 = vmatpush1.bf16.msra.mxu0 0
    %355 = vmatprep.subr.bf16.mxu0 0
    %356 = vmatpush1.bf16.msra.mxu0 0
    %357 = vmatprep.subr.bf16.mxu0 0
    %358 = vmatpush1.bf16.msra.mxu0 0
    %359 = vmatprep.subr.bf16.mxu0 0
    %360 = vmatpush1.bf16.msra.mxu0 0
    %361 = vmatprep.subr.bf16.mxu0 0
    %362 = vmatpush1.bf16.msra.mxu0 %v113
    %363 = vmatprep.subr.bf16.mxu0 0
    %364 = vmatpush1.bf16.msra.mxu0 %v112
    %365 = vmatprep.subr.bf16.mxu0 0
    %366 = vmatpush2.bf16.msra.mxu0 0
    %367 = vmatprep.subr.bf16.mxu0 0
    %368 = vmatpush2.bf16.msra.mxu0 0
    %369 = vmatprep.subr.bf16.mxu0 0
    %370 = vmatpush2.bf16.msra.mxu0 0
    %371 = vmatprep.subr.bf16.mxu0 0
    %372 = vmatpush2.bf16.msra.mxu0 0
    %373 = vmatprep.subr.bf16.mxu0 0
    %374 = vmatpush2.bf16.msra.mxu0 0
    %375 = vmatprep.subr.bf16.mxu0 0
    %376 = vmatpush2.bf16.msra.mxu0 0
    %377 = vmatprep.subr.bf16.mxu0 0
    %378 = vmatpush2.bf16.msra.mxu0 0
    %379 = vmatprep.subr.bf16.mxu0 0
    %380 = vmatpush2.bf16.msra.mxu0 0
    %381 = vmatprep.mubr.bf16.mxu0 0
    %382 = vmatmul.mubr.bf16.gmra.mxu0 %v347
    %v383 = vpop.f32.mrf.mxu0
    %v384 = vadd.f32 0.0, %v383
    %v385 = vpop.f32.mrf.mxu0
    %v386 = vpop.f32.mrf.mxu0
    %v387 = vpop.f32.mrf.mxu0
    %388 = vdwg.mxu0
    %v390 = vrot.slane %v384, 2
    %v392 = vadd.f32 %v94, %v390
    %v393 = vxor.u32 %v392, 2147483648
    %v394 = vmul.f32 %v393, 1.442695
    %v395 = vpow.pop %v394
    %v396 = vadd.f32 %v395, 1.0
    %v397 = vrcp.pop %v396
    %v398 = vmul.f32 1.0, %v397
    %v399 = vtanh.pop %v392
    %v401 = vrot.slane %v334, 6
    %v403 = vmul.f32 %v398, %v401
    %405 = vrot.lane.b32.xlu0 %v399, 32
    %v406 = vpop.permute.xlu0 %405
    %v408 = vmul.f32 %v398, %v406
    %410 = vrot.lane.b32.xlu0 %v408, 32
    %v411 = vpop.permute.xlu0 %410
    %v413 = vadd.f32 %v403, %v411
    %v414 = vtanh.pop %v413
    %416 = vrot.lane.b32.xlu0 %v414, 32
    %v417 = vpop.permute.xlu0 %416
    %v419 = vmul.f32 %v398, %v417
    %v420 = vpack.c.bf16 %v419, %v419
    %v422 = vrot.slane %v420, 3
    %423 = vrot.lane.b32.xlu0 %v422, 64
    %v424 = vpop.permute.xlu0 %423
    %v426 = vsel %vm55, %v424, 0
    %428 = vmatprep.subr.bf16.mxu0 0
    %429 = vmatpush1.bf16.msra.mxu0 0
    %430 = vmatprep.subr.bf16.mxu0 0
    %431 = vmatpush1.bf16.msra.mxu0 0
    %432 = vmatprep.subr.bf16.mxu0 0
    %433 = vmatpush1.bf16.msra.mxu0 0
    %434 = vmatprep.subr.bf16.mxu0 0
    %435 = vmatpush1.bf16.msra.mxu0 0
    %436 = vmatprep.subr.bf16.mxu0 0
    %437 = vmatpush1.bf16.msra.mxu0 0
    %438 = vmatprep.subr.bf16.mxu0 0
    %439 = vmatpush1.bf16.msra.mxu0 0
    %440 = vmatprep.subr.bf16.mxu0 0
    %441 = vmatpush1.bf16.msra.mxu0 %v113
    %442 = vmatprep.subr.bf16.mxu0 0
    %443 = vmatpush1.bf16.msra.mxu0 %v112
    %444 = vmatprep.subr.bf16.mxu0 0
    %445 = vmatpush2.bf16.msra.mxu0 0
    %446 = vmatprep.subr.bf16.mxu0 0
    %447 = vmatpush2.bf16.msra.mxu0 0
    %448 = vmatprep.subr.bf16.mxu0 0
    %449 = vmatpush2.bf16.msra.mxu0 0
    %450 = vmatprep.subr.bf16.mxu0 0
    %451 = vmatpush2.bf16.msra.mxu0 0
    %452 = vmatprep.subr.bf16.mxu0 0
    %453 = vmatpush2.bf16.msra.mxu0 0
    %454 = vmatprep.subr.bf16.mxu0 0
    %455 = vmatpush2.bf16.msra.mxu0 0
    %456 = vmatprep.subr.bf16.mxu0 0
    %457 = vmatpush2.bf16.msra.mxu0 0
    %458 = vmatprep.subr.bf16.mxu0 0
    %459 = vmatpush2.bf16.msra.mxu0 0
    %460 = vmatprep.mubr.bf16.mxu0 0
    %461 = vmatmul.mubr.bf16.gmra.mxu0 %v426
    %v462 = vpop.f32.mrf.mxu0
    %v463 = vadd.f32 0.0, %v462
    %v464 = vpop.f32.mrf.mxu0
    %v465 = vpop.f32.mrf.mxu0
    %v466 = vpop.f32.mrf.mxu0
    %467 = vdwg.mxu0
    %v468 = vadd.f32 %v97, %v463
    %v469 = vxor.u32 %v468, 2147483648
    %v470 = vmul.f32 %v469, 1.442695
    %v471 = vpow.pop %v470
    %v472 = vadd.f32 %v471, 1.0
    %v473 = vrcp.pop %v472
    %v474 = vmul.f32 1.0, %v473
    %v475 = vtanh.pop %v468
    %v477 = vrot.slane %v413, 6
    %v479 = vmul.f32 %v474, %v477
    %481 = vrot.lane.b32.xlu0 %v475, 32
    %v482 = vpop.permute.xlu0 %481
    %v484 = vmul.f32 %v474, %v482
    %486 = vrot.lane.b32.xlu0 %v484, 32
    %v487 = vpop.permute.xlu0 %486
    %v489 = vadd.f32 %v479, %v487
    %v490 = vtanh.pop %v489
    %492 = vrot.lane.b32.xlu0 %v490, 32
    %v493 = vpop.permute.xlu0 %492
    %v495 = vmul.f32 %v474, %v493
    %v496 = vpack.c.bf16 %v495, %v495
    %498 = vrot.lane.b32.xlu0 %v496, 64
    %v499 = vpop.permute.xlu0 %498
    %v501 = vsel %vm55, %v499, 0
    %503 = vmatprep.subr.bf16.mxu0 0
    %504 = vmatpush1.bf16.msra.mxu0 0
    %505 = vmatprep.subr.bf16.mxu0 0
    %506 = vmatpush1.bf16.msra.mxu0 0
    %507 = vmatprep.subr.bf16.mxu0 0
    %508 = vmatpush1.bf16.msra.mxu0 0
    %509 = vmatprep.subr.bf16.mxu0 0
    %510 = vmatpush1.bf16.msra.mxu0 0
    %511 = vmatprep.subr.bf16.mxu0 0
    %512 = vmatpush1.bf16.msra.mxu0 0
    %513 = vmatprep.subr.bf16.mxu0 0
    %514 = vmatpush1.bf16.msra.mxu0 0
    %515 = vmatprep.subr.bf16.mxu0 0
    %516 = vmatpush1.bf16.msra.mxu0 %v113
    %517 = vmatprep.subr.bf16.mxu0 0
    %518 = vmatpush1.bf16.msra.mxu0 %v112
    %519 = vmatprep.subr.bf16.mxu0 0
    %520 = vmatpush2.bf16.msra.mxu0 0
    %521 = vmatprep.subr.bf16.mxu0 0
    %522 = vmatpush2.bf16.msra.mxu0 0
    %523 = vmatprep.subr.bf16.mxu0 0
    %524 = vmatpush2.bf16.msra.mxu0 0
    %525 = vmatprep.subr.bf16.mxu0 0
    %526 = vmatpush2.bf16.msra.mxu0 0
    %527 = vmatprep.subr.bf16.mxu0 0
    %528 = vmatpush2.bf16.msra.mxu0 0
    %529 = vmatprep.subr.bf16.mxu0 0
    %530 = vmatpush2.bf16.msra.mxu0 0
    %531 = vmatprep.subr.bf16.mxu0 0
    %532 = vmatpush2.bf16.msra.mxu0 0
    %533 = vmatprep.subr.bf16.mxu0 0
    %534 = vmatpush2.bf16.msra.mxu0 0
    %535 = vmatprep.mubr.bf16.mxu0 0
    %536 = vmatmul.mubr.bf16.gmra.mxu0 %v501
    %v537 = vpop.f32.mrf.mxu0
    %v538 = vadd.f32 0.0, %v537
    %v539 = vpop.f32.mrf.mxu0
    %v540 = vpop.f32.mrf.mxu0
    %v541 = vpop.f32.mrf.mxu0
    %542 = vdwg.mxu0
    %v544 = vrot.slane %v538, 6
    %v546 = vadd.f32 %v97, %v544
    %v547 = vxor.u32 %v546, 2147483648
    %v548 = vmul.f32 %v547, 1.442695
    %v549 = vpow.pop %v548
    %v550 = vadd.f32 %v549, 1.0
    %v551 = vrcp.pop %v550
    %v552 = vmul.f32 1.0, %v551
    %v553 = vtanh.pop %v546
    %v555 = vrot.slane %v489, 6
    %v557 = vmul.f32 %v552, %v555
    %559 = vrot.lane.b32.xlu0 %v553, 32
    %v560 = vpop.permute.xlu0 %559
    %v562 = vmul.f32 %v552, %v560
    %564 = vrot.lane.b32.xlu0 %v562, 32
    %v565 = vpop.permute.xlu0 %564
    %v567 = vadd.f32 %v557, %v565
    %v568 = vtanh.pop %v567
    %570 = vrot.lane.b32.xlu0 %v568, 32
    %v571 = vpop.permute.xlu0 %570
    %v573 = vmul.f32 %v552, %v571
    %v574 = vpack.c.bf16 %v573, %v573
    %v576 = vrot.slane %v574, 1
    %577 = vrot.lane.b32.xlu0 %v576, 64
    %v578 = vpop.permute.xlu0 %577
    %v580 = vsel %vm55, %v578, 0
    %582 = vmatprep.subr.bf16.mxu0 0
    %583 = vmatpush1.bf16.msra.mxu0 0
    %584 = vmatprep.subr.bf16.mxu0 0
    %585 = vmatpush1.bf16.msra.mxu0 0
    %586 = vmatprep.subr.bf16.mxu0 0
    %587 = vmatpush1.bf16.msra.mxu0 0
    %588 = vmatprep.subr.bf16.mxu0 0
    %589 = vmatpush1.bf16.msra.mxu0 0
    %590 = vmatprep.subr.bf16.mxu0 0
    %591 = vmatpush1.bf16.msra.mxu0 0
    %592 = vmatprep.subr.bf16.mxu0 0
    %593 = vmatpush1.bf16.msra.mxu0 0
    %594 = vmatprep.subr.bf16.mxu0 0
    %595 = vmatpush1.bf16.msra.mxu0 %v113
    %596 = vmatprep.subr.bf16.mxu0 0
    %597 = vmatpush1.bf16.msra.mxu0 %v112
    %598 = vmatprep.subr.bf16.mxu0 0
    %599 = vmatpush2.bf16.msra.mxu0 0
    %600 = vmatprep.subr.bf16.mxu0 0
    %601 = vmatpush2.bf16.msra.mxu0 0
    %602 = vmatprep.subr.bf16.mxu0 0
    %603 = vmatpush2.bf16.msra.mxu0 0
    %604 = vmatprep.subr.bf16.mxu0 0
    %605 = vmatpush2.bf16.msra.mxu0 0
    %606 = vmatprep.subr.bf16.mxu0 0
    %607 = vmatpush2.bf16.msra.mxu0 0
    %608 = vmatprep.subr.bf16.mxu0 0
    %609 = vmatpush2.bf16.msra.mxu0 0
    %610 = vmatprep.subr.bf16.mxu0 0
    %611 = vmatpush2.bf16.msra.mxu0 0
    %612 = vmatprep.subr.bf16.mxu0 0
    %613 = vmatpush2.bf16.msra.mxu0 0
    %614 = vmatprep.mubr.bf16.mxu0 0
    %615 = vmatmul.mubr.bf16.gmra.mxu0 %v580
    %v616 = vpop.f32.mrf.mxu0
    %v617 = vadd.f32 0.0, %v616
    %v618 = vpop.f32.mrf.mxu0
    %v619 = vpop.f32.mrf.mxu0
    %v620 = vpop.f32.mrf.mxu0
    %621 = vdwg.mxu0
    %v623 = vrot.slane %v617, 4
    %v625 = vadd.f32 %v97, %v623
    %v626 = vxor.u32 %v625, 2147483648
    %v627 = vmul.f32 %v626, 1.442695
    %v628 = vpow.pop %v627
    %v629 = vadd.f32 %v628, 1.0
    %v630 = vrcp.pop %v629
    %v631 = vmul.f32 1.0, %v630
    %v632 = vtanh.pop %v625
    %v634 = vrot.slane %v567, 6
    %v636 = vmul.f32 %v631, %v634
    %638 = vrot.lane.b32.xlu0 %v632, 32
    %v639 = vpop.permute.xlu0 %638
    %v641 = vmul.f32 %v631, %v639
    %643 = vrot.lane.b32.xlu0 %v641, 32
    %v644 = vpop.permute.xlu0 %643
    %v646 = vadd.f32 %v636, %v644
    %v647 = vtanh.pop %v646
    %649 = vrot.lane.b32.xlu0 %v647, 32
    %v650 = vpop.permute.xlu0 %649
    %v652 = vmul.f32 %v631, %v650
    %v653 = vpack.c.bf16 %v652, %v652
    %v655 = vrot.slane %v653, 2
    %656 = vrot.lane.b32.xlu0 %v655, 64
    %v657 = vpop.permute.xlu0 %656
    %v659 = vsel %vm55, %v657, 0
    %661 = vmatprep.subr.bf16.mxu0 0
    %662 = vmatpush1.bf16.msra.mxu0 0
    %663 = vmatprep.subr.bf16.mxu0 0
    %664 = vmatpush1.bf16.msra.mxu0 0
    %665 = vmatprep.subr.bf16.mxu0 0
    %666 = vmatpush1.bf16.msra.mxu0 0
    %667 = vmatprep.subr.bf16.mxu0 0
    %668 = vmatpush1.bf16.msra.mxu0 0
    %669 = vmatprep.subr.bf16.mxu0 0
    %670 = vmatpush1.bf16.msra.mxu0 0
    %671 = vmatprep.subr.bf16.mxu0 0
    %672 = vmatpush1.bf16.msra.mxu0 0
    %673 = vmatprep.subr.bf16.mxu0 0
    %674 = vmatpush1.bf16.msra.mxu0 %v113
    %675 = vmatprep.subr.bf16.mxu0 0
    %676 = vmatpush1.bf16.msra.mxu0 %v112
    %677 = vmatprep.subr.bf16.mxu0 0
    %678 = vmatpush2.bf16.msra.mxu0 0
    %679 = vmatprep.subr.bf16.mxu0 0
    %680 = vmatpush2.bf16.msra.mxu0 0
    %681 = vmatprep.subr.bf16.mxu0 0
    %682 = vmatpush2.bf16.msra.mxu0 0
    %683 = vmatprep.subr.bf16.mxu0 0
    %684 = vmatpush2.bf16.msra.mxu0 0
    %685 = vmatprep.subr.bf16.mxu0 0
    %686 = vmatpush2.bf16.msra.mxu0 0
    %687 = vmatprep.subr.bf16.mxu0 0
    %688 = vmatpush2.bf16.msra.mxu0 0
    %689 = vmatprep.subr.bf16.mxu0 0
    %690 = vmatpush2.bf16.msra.mxu0 0
    %691 = vmatprep.subr.bf16.mxu0 0
    %692 = vmatpush2.bf16.msra.mxu0 0
    %693 = vmatprep.mubr.bf16.mxu0 0
    %694 = vmatmul.mubr.bf16.gmra.mxu0 %v659
    %v695 = vpop.f32.mrf.mxu0
    %v696 = vadd.f32 0.0, %v695
    %v697 = vpop.f32.mrf.mxu0
    %v698 = vpop.f32.mrf.mxu0
    %v699 = vpop.f32.mrf.mxu0
    %700 = vdwg.mxu0
    %v702 = vrot.slane %v696, 2
    %v704 = vadd.f32 %v97, %v702
    %v705 = vxor.u32 %v704, 2147483648
    %v706 = vmul.f32 %v705, 1.442695
    %v707 = vpow.pop %v706
    %v708 = vadd.f32 %v707, 1.0
    %v709 = vrcp.pop %v708
    %v710 = vmul.f32 1.0, %v709
    %v711 = vtanh.pop %v704
    %v713 = vrot.slane %v646, 6
    %v715 = vmul.f32 %v710, %v713
    %717 = vrot.lane.b32.xlu0 %v711, 32
    %v718 = vpop.permute.xlu0 %717
    %v720 = vmul.f32 %v710, %v718
    %722 = vrot.lane.b32.xlu0 %v720, 32
    %v723 = vpop.permute.xlu0 %722
    %v725 = vadd.f32 %v715, %v723
    %v726 = vtanh.pop %v725
    %728 = vrot.lane.b32.xlu0 %v726, 32
    %v729 = vpop.permute.xlu0 %728
    %v731 = vmul.f32 %v710, %v729
    %v732 = vld [vmem:[%s4] sm:$0xff]
    %v733 = vld [vmem:[%s4 + $0x8] sm:$0xff]
    %v734 = vld [vmem:[%s4 + $0x10] sm:$0xff]
    %v735 = vld [vmem:[%s4 + $0x18] sm:$0xff]
    %s736 = scalar_lea.vmem %s4, 32
    %v737 = vld [vmem:[%s736] sm:$0xff]
    %v738 = vld [vmem:[%s736 + $0x8] sm:$0xff]
    %v739 = vld [vmem:[%s736 + $0x10] sm:$0xff]
    %v740 = vld [vmem:[%s736 + $0x18] sm:$0xff]
    %v742 = vrot.slane %v731, 6
    %743 = vrot.lane.b32.xlu0 %v742, 64
    %v744 = vpop.permute.xlu0 %743
    %v745 = vsel %vm55, %v744, 0
    %747 = vmatprep.subr.mxu0 0.0
    %748 = vmatpush1.msra.mxu0 0.0
    %749 = vmatprep.subr.mxu0 0.0
    %750 = vmatpush1.msra.mxu0 0.0
    %751 = vmatprep.subr.mxu0 0.0
    %752 = vmatpush1.msra.mxu0 0.0
    %753 = vmatprep.subr.mxu0 0.0
    %754 = vmatpush1.msra.mxu0 0.0
    %755 = vmatprep.subr.mxu0 0.0
    %756 = vmatpush1.msra.mxu0 0.0
    %757 = vmatprep.subr.mxu0 0.0
    %758 = vmatpush1.msra.mxu0 0.0
    %759 = vmatprep.subr.mxu0 0.0
    %760 = vmatpush1.msra.mxu0 0.0
    %761 = vmatprep.subr.mxu0 0.0
    %762 = vmatpush1.msra.mxu0 0.0
    %763 = vmatprep.subr.mxu0 0.0
    %764 = vmatpush1.msra.mxu0 0.0
    %765 = vmatprep.subr.mxu0 0.0
    %766 = vmatpush1.msra.mxu0 0.0
    %767 = vmatprep.subr.mxu0 0.0
    %768 = vmatpush1.msra.mxu0 0.0
    %769 = vmatprep.subr.mxu0 0.0
    %770 = vmatpush1.msra.mxu0 0.0
    %771 = vmatprep.subr.mxu0 0.0
    %772 = vmatpush1.msra.mxu0 %v740
    %773 = vmatprep.subr.mxu0 0.0
    %774 = vmatpush1.msra.mxu0 %v739
    %775 = vmatprep.subr.mxu0 0.0
    %776 = vmatpush1.msra.mxu0 %v738
    %777 = vmatprep.subr.mxu0 0.0
    %778 = vmatpush1.msra.mxu0 %v737
    %779 = vmatprep.subr.mxu0 0.0
    %780 = vmatpush2.msra.mxu0 0.0
    %781 = vmatprep.subr.mxu0 0.0
    %782 = vmatpush2.msra.mxu0 0.0
    %783 = vmatprep.subr.mxu0 0.0
    %784 = vmatpush2.msra.mxu0 0.0
    %785 = vmatprep.subr.mxu0 0.0
    %786 = vmatpush2.msra.mxu0 0.0
    %787 = vmatprep.subr.mxu0 0.0
    %788 = vmatpush2.msra.mxu0 0.0
    %789 = vmatprep.subr.mxu0 0.0
    %790 = vmatpush2.msra.mxu0 0.0
    %791 = vmatprep.subr.mxu0 0.0
    %792 = vmatpush2.msra.mxu0 0.0
    %793 = vmatprep.subr.mxu0 0.0
    %794 = vmatpush2.msra.mxu0 0.0
    %795 = vmatprep.subr.mxu0 0.0
    %796 = vmatpush2.msra.mxu0 0.0
    %797 = vmatprep.subr.mxu0 0.0
    %798 = vmatpush2.msra.mxu0 0.0
    %799 = vmatprep.subr.mxu0 0.0
    %800 = vmatpush2.msra.mxu0 0.0
    %801 = vmatprep.subr.mxu0 0.0
    %802 = vmatpush2.msra.mxu0 0.0
    %803 = vmatprep.subr.mxu0 0.0
    %804 = vmatpush2.msra.mxu0 0.0
    %805 = vmatprep.subr.mxu0 0.0
    %806 = vmatpush2.msra.mxu0 0.0
    %807 = vmatprep.subr.mxu0 0.0
    %808 = vmatpush2.msra.mxu0 0.0
    %809 = vmatprep.subr.mxu0 0.0
    %810 = vmatpush2.msra.mxu0 0.0
    %811 = vmatprep.mubr.f32.mxu0 0.0
    %812 = vmatmul.mubr.f32.gmra.mxu0 %v745
    %v813 = vpop.f32.mrf.mxu0
    %v814 = vadd.f32 0.0, %v813
    %v815 = vpop.f32.mrf.mxu0
    %816 = vdwg.mxu0
    %818 = vrot.lane.b32.xlu0 %v183, 64
    %v819 = vpop.permute.xlu0 %818
    %v820 = vsel %vm55, %v819, 0
    %822 = vmatprep.subr.mxu0 0.0
    %823 = vmatpush1.msra.mxu0 0.0
    %824 = vmatprep.subr.mxu0 0.0
    %825 = vmatpush1.msra.mxu0 0.0
    %826 = vmatprep.subr.mxu0 0.0
    %827 = vmatpush1.msra.mxu0 0.0
    %828 = vmatprep.subr.mxu0 0.0
    %829 = vmatpush1.msra.mxu0 0.0
    %830 = vmatprep.subr.mxu0 0.0
    %831 = vmatpush1.msra.mxu0 0.0
    %832 = vmatprep.subr.mxu0 0.0
    %833 = vmatpush1.msra.mxu0 0.0
    %834 = vmatprep.subr.mxu0 0.0
    %835 = vmatpush1.msra.mxu0 0.0
    %836 = vmatprep.subr.mxu0 0.0
    %837 = vmatpush1.msra.mxu0 0.0
    %838 = vmatprep.subr.mxu0 0.0
    %839 = vmatpush1.msra.mxu0 0.0
    %840 = vmatprep.subr.mxu0 0.0
    %841 = vmatpush1.msra.mxu0 0.0
    %842 = vmatprep.subr.mxu0 0.0
    %843 = vmatpush1.msra.mxu0 0.0
    %844 = vmatprep.subr.mxu0 0.0
    %845 = vmatpush1.msra.mxu0 0.0
    %846 = vmatprep.subr.mxu0 0.0
    %847 = vmatpush1.msra.mxu0 %v735
    %848 = vmatprep.subr.mxu0 0.0
    %849 = vmatpush1.msra.mxu0 %v734
    %850 = vmatprep.subr.mxu0 0.0
    %851 = vmatpush1.msra.mxu0 %v733
    %852 = vmatprep.subr.mxu0 0.0
    %853 = vmatpush1.msra.mxu0 %v732
    %854 = vmatprep.subr.mxu0 0.0
    %855 = vmatpush2.msra.mxu0 0.0
    %856 = vmatprep.subr.mxu0 0.0
    %857 = vmatpush2.msra.mxu0 0.0
    %858 = vmatprep.subr.mxu0 0.0
    %859 = vmatpush2.msra.mxu0 0.0
    %860 = vmatprep.subr.mxu0 0.0
    %861 = vmatpush2.msra.mxu0 0.0
    %862 = vmatprep.subr.mxu0 0.0
    %863 = vmatpush2.msra.mxu0 0.0
    %864 = vmatprep.subr.mxu0 0.0
    %865 = vmatpush2.msra.mxu0 0.0
    %866 = vmatprep.subr.mxu0 0.0
    %867 = vmatpush2.msra.mxu0 0.0
    %868 = vmatprep.subr.mxu0 0.0
    %869 = vmatpush2.msra.mxu0 0.0
    %870 = vmatprep.subr.mxu0 0.0
    %871 = vmatpush2.msra.mxu0 0.0
    %872 = vmatprep.subr.mxu0 0.0
    %873 = vmatpush2.msra.mxu0 0.0
    %874 = vmatprep.subr.mxu0 0.0
    %875 = vmatpush2.msra.mxu0 0.0
    %876 = vmatprep.subr.mxu0 0.0
    %877 = vmatpush2.msra.mxu0 0.0
    %878 = vmatprep.subr.mxu0 0.0
    %879 = vmatpush2.msra.mxu0 0.0
    %880 = vmatprep.subr.mxu0 0.0
    %881 = vmatpush2.msra.mxu0 0.0
    %882 = vmatprep.subr.mxu0 0.0
    %883 = vmatpush2.msra.mxu0 0.0
    %884 = vmatprep.subr.mxu0 0.0
    %885 = vmatpush2.msra.mxu0 0.0
    %886 = vmatprep.mubr.f32.mxu0 0.0
    %887 = vmatmul.mubr.f32.gmra.mxu0 %v820
    %v888 = vpop.f32.mrf.mxu0
    %v889 = vadd.f32 %v814, %v888
    %v890 = vpop.f32.mrf.mxu0
    %891 = vdwg.mxu0
    %v892 = vld [vmem:[%s5] sm:$0x1]
    %v894 = vlaneseq
    %v895 = vshrl.u32 %v894, 7
    %v896 = vsub.s32 0, %v895
    %v897 = vrot.slane %v892, %v896
    %v899 = vadd.f32 %v889, %v897
    %v900 = vmax.f32 %v899, 0.0
    %vm901 = vcmask 25600
    %v902 = vsel %vm901, %v900, -inf
    %903 = vmax.xlane.f32.xlu0 %v902
    %v904 = vpop.xlane.xlu0 %903
    %v905 = vsub.f32 %v900, %v904
    %v906 = vmul.f32 %v905, 1.442695
    %v907 = vpow.pop %v906
    %v908 = vsel %vm901, %v907, 0.0
    %909 = vadd.xlane.f32.xlu0 %v908
    %v910 = vpop.xlane.xlu0 %909
    %v911 = vrcp.pop %v910
    %v912 = vmul.f32 %v907, %v911
    %913 = vst.msk [vmem:[#allocation2] sm:$0x3] %vm901, %v912
    // Predicated region
    $region26: #{tpu_custom_call.1} parent=1 // pred_check
      _
    $region27: #{tpu_custom_call.1} parent=1 // pred_check_branch
      %915 = sbr.rel (0) target = $region29
    $region28: #{tpu_custom_call.1} parent=1 // pred_region
      %s917 = ssub.s32 32, 32
      %918 = vsyncadd [#allocation3], %s917
      %s920 = sshll.u32 [#allocation2], 4
      %s921 = int_to_ptr.vmem [resolvable:$true] %s920
      %923 = dma.vmem_to_hbm [thread:$0]  %s921, 32, %s6, [#allocation3]
    $region29: #{tpu_custom_call.1} parent=1 // pred_fallthru
      _
    // Predicated region
    $region30: #{tpu_custom_call.1} parent=1 // pred_check
      _
    $region31: #{tpu_custom_call.1} parent=1 // pred_check_branch
      %925 = sbr.rel (0) target = $region33
    $region32: #{tpu_custom_call.1} parent=1 // pred_region
      %926 = dma.done [#allocation3], 32
    $region33: #{tpu_custom_call.1} parent=1 // pred_fallthru
      _
    %927 = vsyncpa [#allocation3], 1

</llo_original>
